<compile_context>
chip_gen: v6e
topology: v6e:2x2x1
jax: 0.10.0
libtpu: 0.0.40
codegen_flags: <defaults>
</compile_context>

<pallas_src>
import functools

import jax
import jax.numpy as jnp
from jax.experimental import pallas as pl
from jax.experimental.pallas import tpu as pltpu


def _attention_kernel(enc_ref, decb_ref, we_ref, benc_ref, ww_ref, bw_ref,
                      attn_ref, wts_ref, *, s_valid):
    # Block shapes: enc (TB, S, E), dec_pb (TB, H); W_enc arrives pre-transposed
    # as (E, H) so the MXU is fed directly.
    TB, S, E = enc_ref.shape
    H = we_ref.shape[1]

    # Batch-fused encoder projection: (TB*S, E) @ (E, H) on the MXU (bf16 feeds,
    # f32 accumulation).  Collapsing/expanding the leading (TB, S) dims is
    # layout-free because the wrapper pads S to a multiple of 8 and the lane
    # dims (E / H) are untouched -> no VMEM relayout copies.
    enc_dot = jnp.dot(enc_ref[...].reshape(TB * S, E), we_ref[...],
                      preferred_element_type=jnp.float32).reshape(TB, S, H)

    # decb = dec @ W_dec^T + b_dec + b_enc, computed on the host wrapper.
    # b_enc is re-added once to the final attn below (sum_s w_s == 1), which
    # removes a full (TB, S, H) broadcast add from the VALU.
    h = jnp.tanh(enc_dot + decb_ref[...][:, None, :])             # (TB, S, H)

    # scores[b, s] = sum_h W_w[h] * h[b, s, h] + b_w   (lane reduction over H)
    scores = jnp.sum(h * ww_ref[...], axis=-1) + bw_ref[...]      # (TB, S)

    if s_valid != S:  # static: only emitted when the wrapper padded S
        mask = jax.lax.broadcasted_iota(jnp.int32, (TB, S), 1) < s_valid
        scores = jnp.where(mask, scores, -jnp.inf)

    # Softmax over the sequence axis (sequence sits on the lane axis).
    m = jnp.max(scores, axis=-1, keepdims=True)
    e = jnp.exp(scores - m)
    denom = jnp.sum(e, axis=-1, keepdims=True)
    r = pl.reciprocal(denom, approx=True)          # EUP slot (otherwise idle)
    r = r * (2.0 - denom * r)                      # one Newton step -> ~f32 bits
    w = e * r                                      # (TB, S)

    # Weighted sum of the projected encoder states (values = enc@W_enc^T + b_enc).
    attn = jnp.sum(enc_dot * w[:, :, None], axis=1) + benc_ref[...]   # (TB, H)

    attn_ref[...] = attn.astype(attn_ref.dtype)
    wts_ref[...] = w.astype(wts_ref.dtype)


def _step_vmem_bytes(tb, s, e, h, in_bytes):
    """Approximate per-grid-step resident VMEM footprint."""
    enc_io = 2 * tb * s * e * in_bytes          # double-buffered enc tile
    interm = 2 * tb * s * h * 4                 # enc_dot + tanh intermediates (f32)
    wgt = 2 * e * h * in_bytes                  # (double-buffered) W_enc^T
    decb = 2 * tb * h * 4                       # double-buffered dec_pb
    outs = 2 * tb * (h + s) * 4                 # double-buffered outputs
    return enc_io + interm + wgt + decb + outs


def _pick_batch_block(batch, s, e, h, mxu_dtype):
    """Pick tb: multiple of 8, >= 4 grid steps when possible (even preferred
    for v7x's 2 TCs), per-step footprint under a v7x-safe ~24 MiB budget."""
    in_bytes = jnp.dtype(mxu_dtype).itemsize
    budget = 24 * 2**20
    cands = []
    for tb in range(8, batch + 1, 8):
        if batch % tb or _step_vmem_bytes(tb, s, e, h, in_bytes) > budget:
            continue
        steps = batch // tb
        if steps >= 4 or (steps >= 2 and tb * s >= 256):
            cands.append(tb)
    if not cands:
        return batch                      # tiny batch: full-batch fusion fallback
    even = [tb for tb in cands if (batch // tb) % 2 == 0]
    return max(even or cands)             # biggest tile, even grid preferred


def bigru_attention(enc, dec, params, *, batch_block=None,
                    mxu_dtype=jnp.bfloat16):
    """enc: (B, S, E) f32, dec: (B, D) f32. Returns (attn_out (B,H), weights (B,S))."""
    B, S, E = enc.shape
    D = dec.shape[1]
    w_enc, b_enc, w_dec, b_dec, w_w, b_w = params
    H = w_enc.shape[0]

    # Pad S to a multiple of 8 so in-kernel leading-dim reshapes are layout-free.
    s_pad = -(-S // 8) * 8
    if s_pad != S:
        enc = jnp.pad(enc, ((0, 0), (0, s_pad - S), (0, 0)))

    tb = batch_block if batch_block is not None else _pick_batch_block(
        B, s_pad, E, H, mxu_dtype)
    assert B % tb == 0, "batch_block must divide the batch size"

    # Hoisted decoder projection with all tanh-side biases folded in (f32, XLA).
    dec_pb = (dec.astype(jnp.float32) @ w_dec.T.astype(jnp.float32)
              + b_dec + b_enc).astype(jnp.float32)                 # (B, H)

    # Host-side layout plumbing: pre-transposed bf16 MXU feeds, 2-D f32 biases.
    enc_x = enc.astype(mxu_dtype)
    we_t = w_enc.T.astype(mxu_dtype)                               # (E, H)
    benc2 = b_enc.reshape(1, H).astype(jnp.float32)
    ww2 = w_w.reshape(1, H).astype(jnp.float32)
    bw2 = b_w.reshape(1, 1).astype(jnp.float32)

    in_bytes = jnp.dtype(mxu_dtype).itemsize
    step_bytes = _step_vmem_bytes(tb, s_pad, E, H, in_bytes)
    vmem_limit = int(min(48 * 2**20, max(32 * 2**20, 2 * step_bytes)))

    cost = pl.CostEstimate(
        flops=2 * B * s_pad * E * H + 4 * B * s_pad * H,
        transcendentals=B * s_pad * (H + 1),
        bytes_accessed=(B * s_pad * E * in_bytes + E * H * in_bytes
                        + B * H * 4 + B * H * 4 + B * s_pad * 4),
    )

    grid_spec = pltpu.PrefetchScalarGridSpec(
        num_scalar_prefetch=0,
        grid=(B // tb,),
        in_specs=[
            pl.BlockSpec((tb, s_pad, E), lambda b: (b, 0, 0)),   # enc (batch tile)
            pl.BlockSpec((tb, H), lambda b: (b, 0)),             # dec_pb
            pl.BlockSpec((E, H), lambda b: (0, 0)),              # W_enc^T
            pl.BlockSpec((1, H), lambda b: (0, 0)),              # b_enc
            pl.BlockSpec((1, H), lambda b: (0, 0)),              # W_w
            pl.BlockSpec((1, 1), lambda b: (0, 0)),              # b_w
        ],
        out_specs=[
            pl.BlockSpec((tb, H), lambda b: (b, 0)),             # attn_out
            pl.BlockSpec((tb, s_pad), lambda b: (b, 0)),         # weights
        ],
    )

    attn, wts = pl.pallas_call(
        functools.partial(_attention_kernel, s_valid=S),
        out_shape=(
            jax.ShapeDtypeStruct((B, H), jnp.float32),
            jax.ShapeDtypeStruct((B, s_pad), jnp.float32),
        ),
        grid_spec=grid_spec,
        compiler_params=pltpu.CompilerParams(
            dimension_semantics=("parallel",),
            vmem_limit_bytes=vmem_limit),
        cost_estimate=cost,
    )(enc_x, dec_pb, we_t, benc2, ww2, bw2)

    if s_pad != S:
        wts = wts[:, :S]
    return attn, wts


def _reference(enc, dec, params):
    """Plain-JAX f32 reference for validation."""
    w_enc, b_enc, w_dec, b_dec, w_w, b_w = params
    enc_p = jnp.einsum("bse,he->bsh", enc, w_enc) + b_enc
    dec_p = dec @ w_dec.T + b_dec
    h = jnp.tanh(enc_p + dec_p[:, None, :])
    scores = jnp.einsum("bsh,oh->bso", h, w_w)[..., 0] + b_w[0]
    weights = jax.nn.softmax(scores, axis=1)
    attn = jnp.einsum("bs,bsh->bh", weights, enc_p)
    return attn, weights


def _init_params(key, enc_dim, dec_dim, hidden):
    """Deterministic PyTorch-Linear-style init: U(-1/sqrt(fan_in), 1/sqrt(fan_in))."""
    ks = jax.random.split(key, 6)

    def lin(kw, kb, fan_out, fan_in):
        bound = 1.0 / (fan_in ** 0.5)
        w = jax.random.uniform(kw, (fan_out, fan_in), jnp.float32, -bound, bound)
        b = jax.random.uniform(kb, (fan_out,), jnp.float32, -bound, bound)
        return w, b

    w_enc, b_enc = lin(ks[0], ks[1], hidden, enc_dim)
    w_dec, b_dec = lin(ks[2], ks[3], hidden, dec_dim)
    w_w, b_w = lin(ks[4], ks[5], 1, hidden)
    return w_enc, b_enc, w_dec, b_dec, w_w, b_w


if __name__ == "__main__":
    # Small shapes, but large enough to exercise the multi-step grid:
    # tb = 8 -> grid = 4 (even), each step feeds 64 rows to the MXU.
    B, S, ENC_DIM, DEC_DIM, HIDDEN = 32, 8, 16, 32, 32

    key = jax.random.PRNGKey(0)
    k_enc, k_dec, k_p = jax.random.split(key, 3)

    enc = jax.random.normal(k_enc, (B, S, ENC_DIM), jnp.float32)
    dec = jax.random.normal(k_dec, (B, DEC_DIM), jnp.float32)
    params = _init_params(k_p, ENC_DIM, DEC_DIM, HIDDEN)

    ref_attn, ref_w = _reference(enc, dec, params)

    # Exact-precision path (f32 MXU feeds): tight tolerances.
    attn32, w32 = bigru_attention(enc, dec, params, mxu_dtype=jnp.float32)
    jax.block_until_ready((attn32, w32))
    assert attn32.shape == (B, HIDDEN) and w32.shape == (B, S)
    assert jnp.allclose(attn32, ref_attn, atol=1e-4, rtol=1e-4)
    assert jnp.allclose(w32, ref_w, atol=1e-5, rtol=1e-4)

    # Production path (default bf16 MXU feeds, f32 accumulation/softmax):
    # relaxed tolerances against the f32 reference.
    attn_bf, w_bf = bigru_attention(enc, dec, params)
    jax.block_until_ready((attn_bf, w_bf))
    assert attn_bf.shape == (B, HIDDEN) and w_bf.shape == (B, S)
    assert jnp.allclose(attn_bf, ref_attn, atol=3e-2, rtol=3e-2)
    assert jnp.allclose(w_bf, ref_w, atol=1e-2, rtol=1e-1)

    print("KERNEL_OK")
</pallas_src>

<mosaic_0001>
module attributes {stable_mosaic.version = 11 : i64} {
  func.func @_attention_kernel(%arg0: i32, %arg1: memref<8x8x16xf32, #tpu.memory_space<vmem>>, %arg2: memref<8x32xf32, #tpu.memory_space<vmem>>, %arg3: memref<16x32xf32, #tpu.memory_space<vmem>>, %arg4: memref<1x32xf32, #tpu.memory_space<vmem>>, %arg5: memref<1x32xf32, #tpu.memory_space<vmem>>, %arg6: memref<1x1xf32, #tpu.memory_space<vmem>>, %arg7: memref<8x32xf32, #tpu.memory_space<vmem>>, %arg8: memref<8x8xf32, #tpu.memory_space<vmem>>) attributes {dimension_semantics = [#tpu.dimension_semantics<parallel>], iteration_bounds = array<i64: 4>, scalar_prefetch = 0 : i64, scratch_operands = 0 : i64, tpu.core_type = #tpu.core_type<tc>, window_params = [{transform_indices = @transform_0, window_bounds = array<i64: 8, 8, 16>}, {transform_indices = @transform_1, window_bounds = array<i64: 8, 32>}, {pipeline_mode = #tpu.pipeline_mode<synchronous>, transform_indices = @transform_2, window_bounds = array<i64: 16, 32>}, {pipeline_mode = #tpu.pipeline_mode<synchronous>, transform_indices = @transform_3, window_bounds = array<i64: 1, 32>}, {pipeline_mode = #tpu.pipeline_mode<synchronous>, transform_indices = @transform_4, window_bounds = array<i64: 1, 32>}, {pipeline_mode = #tpu.pipeline_mode<synchronous>, transform_indices = @transform_5, window_bounds = array<i64: 1, 1>}, {transform_indices = @transform_6, window_bounds = array<i64: 8, 32>}, {transform_indices = @transform_7, window_bounds = array<i64: 8, 8>}]} {
    %c0 = arith.constant 0 : index
    %c0_0 = arith.constant 0 : index
    %c0_1 = arith.constant 0 : index
    %0 = vector.load %arg1[%c0, %c0_0, %c0_1] : memref<8x8x16xf32, #tpu.memory_space<vmem>>, vector<8x8x16xf32>
    %1 = vector.shape_cast %0 : vector<8x8x16xf32> to vector<64x16xf32>
    %c0_2 = arith.constant 0 : index
    %c0_3 = arith.constant 0 : index
    %2 = vector.load %arg3[%c0_2, %c0_3] : memref<16x32xf32, #tpu.memory_space<vmem>>, vector<16x32xf32>
    %cst = arith.constant dense<0.000000e+00> : vector<64x32xf32>
    %3 = tpu.matmul %1, %2, %cst {dimension_numbers = #tpu.dot_dimension_numbers<[1], [0], [0], [1], [0, 0, 1, 1], [], []>} : vector<64x16xf32>, vector<16x32xf32>, vector<64x32xf32> -> vector<64x32xf32>
    %4 = vector.shape_cast %3 : vector<64x32xf32> to vector<8x8x32xf32>
    %c0_4 = arith.constant 0 : index
    %c0_5 = arith.constant 0 : index
    %5 = vector.load %arg2[%c0_4, %c0_5] : memref<8x32xf32, #tpu.memory_space<vmem>>, vector<8x32xf32>
    %6 = vector.shape_cast %5 : vector<8x32xf32> to vector<8x1x32xf32>
    %7 = vector.broadcast %6 : vector<8x1x32xf32> to vector<8x8x32xf32>
    %8 = arith.addf %4, %7 : vector<8x8x32xf32>
    %9 = math.tanh %8 : vector<8x8x32xf32>
    %c0_6 = arith.constant 0 : index
    %c0_7 = arith.constant 0 : index
    %10 = vector.load %arg5[%c0_6, %c0_7] : memref<1x32xf32, #tpu.memory_space<vmem>>, vector<1x32xf32>
    %11 = vector.shape_cast %10 : vector<1x32xf32> to vector<1x1x32xf32>
    %12 = vector.broadcast %11 : vector<1x1x32xf32> to vector<8x8x32xf32>
    %13 = arith.mulf %9, %12 : vector<8x8x32xf32>
    %cst_8 = arith.constant dense<0.000000e+00> : vector<8x8xf32>
    %14 = vector.multi_reduction <add>, %13, %cst_8 [2] : vector<8x8x32xf32> to vector<8x8xf32>
    %c0_9 = arith.constant 0 : index
    %c0_10 = arith.constant 0 : index
    %15 = vector.load %arg6[%c0_9, %c0_10] : memref<1x1xf32, #tpu.memory_space<vmem>>, vector<1x1xf32>
    %16 = vector.broadcast %15 : vector<1x1xf32> to vector<8x8xf32>
    %17 = arith.addf %14, %16 : vector<8x8xf32>
    %cst_11 = arith.constant dense<0xFF800000> : vector<8xf32>
    %18 = vector.multi_reduction <maximumf>, %17, %cst_11 [1] : vector<8x8xf32> to vector<8xf32>
    %19 = vector.shape_cast %18 : vector<8xf32> to vector<8x1xf32>
    %20 = vector.broadcast %19 : vector<8x1xf32> to vector<8x8xf32>
    %21 = arith.subf %17, %20 : vector<8x8xf32>
    %22 = math.exp %21 : vector<8x8xf32>
    %cst_12 = arith.constant dense<0.000000e+00> : vector<8xf32>
    %23 = vector.multi_reduction <add>, %22, %cst_12 [1] : vector<8x8xf32> to vector<8xf32>
    %24 = vector.shape_cast %23 : vector<8xf32> to vector<8x1xf32>
    %25 = tpu.reciprocal %24 {approx = true} : vector<8x1xf32> -> vector<8x1xf32>
    %26 = arith.mulf %24, %25 : vector<8x1xf32>
    %cst_13 = arith.constant 2.000000e+00 : f32
    %27 = vector.broadcast %cst_13 : f32 to vector<8x1xf32>
    %28 = arith.subf %27, %26 : vector<8x1xf32>
    %29 = arith.mulf %25, %28 : vector<8x1xf32>
    %30 = vector.broadcast %29 : vector<8x1xf32> to vector<8x8xf32>
    %31 = arith.mulf %22, %30 : vector<8x8xf32>
    %32 = vector.shape_cast %31 : vector<8x8xf32> to vector<8x8x1xf32>
    %33 = vector.broadcast %32 : vector<8x8x1xf32> to vector<8x8x32xf32>
    %34 = arith.mulf %4, %33 : vector<8x8x32xf32>
    %cst_14 = arith.constant dense<0.000000e+00> : vector<8x32xf32>
    %35 = vector.multi_reduction <add>, %34, %cst_14 [1] : vector<8x8x32xf32> to vector<8x32xf32>
    %c0_15 = arith.constant 0 : index
    %c0_16 = arith.constant 0 : index
    %36 = vector.load %arg4[%c0_15, %c0_16] : memref<1x32xf32, #tpu.memory_space<vmem>>, vector<1x32xf32>
    %37 = vector.broadcast %36 : vector<1x32xf32> to vector<8x32xf32>
    %38 = arith.addf %35, %37 : vector<8x32xf32>
    %c0_17 = arith.constant 0 : index
    %c0_18 = arith.constant 0 : index
    %39 = vector.load %arg7[%c0_17, %c0_18] : memref<8x32xf32, #tpu.memory_space<vmem>>, vector<8x32xf32>
    tpu.vector_store %arg7[%c0_17, %c0_18], %38 {strides = array<i32>} : memref<8x32xf32, #tpu.memory_space<vmem>>, vector<8x32xf32>,
    %c0_19 = arith.constant 0 : index
    %c0_20 = arith.constant 0 : index
    %40 = vector.load %arg8[%c0_19, %c0_20] : memref<8x8xf32, #tpu.memory_space<vmem>>, vector<8x8xf32>
    tpu.vector_store %arg8[%c0_19, %c0_20], %31 {strides = array<i32>} : memref<8x8xf32, #tpu.memory_space<vmem>>, vector<8x8xf32>,
    return
  }
  func.func @transform_0(%arg0: i32) -> (i32, i32, i32) {
    %c0_i32 = arith.constant 0 : i32
    %c0_i32_0 = arith.constant 0 : i32
    %c0_i32_1 = arith.constant 0 : i32
    return %arg0, %c0_i32, %c0_i32_0 : i32, i32, i32
  }
  func.func @transform_1(%arg0: i32) -> (i32, i32) {
    %c0_i32 = arith.constant 0 : i32
    %c0_i32_0 = arith.constant 0 : i32
    return %arg0, %c0_i32 : i32, i32
  }
  func.func @transform_2(%arg0: i32) -> (i32, i32) {
    %c0_i32 = arith.constant 0 : i32
    %c0_i32_0 = arith.constant 0 : i32
    %c0_i32_1 = arith.constant 0 : i32
    return %c0_i32, %c0_i32_0 : i32, i32
  }
  func.func @transform_3(%arg0: i32) -> (i32, i32) {
    %c0_i32 = arith.constant 0 : i32
    %c0_i32_0 = arith.constant 0 : i32
    %c0_i32_1 = arith.constant 0 : i32
    return %c0_i32, %c0_i32_0 : i32, i32
  }
  func.func @transform_4(%arg0: i32) -> (i32, i32) {
    %c0_i32 = arith.constant 0 : i32
    %c0_i32_0 = arith.constant 0 : i32
    %c0_i32_1 = arith.constant 0 : i32
    return %c0_i32, %c0_i32_0 : i32, i32
  }
  func.func @transform_5(%arg0: i32) -> (i32, i32) {
    %c0_i32 = arith.constant 0 : i32
    %c0_i32_0 = arith.constant 0 : i32
    %c0_i32_1 = arith.constant 0 : i32
    return %c0_i32, %c0_i32_0 : i32, i32
  }
  func.func @transform_6(%arg0: i32) -> (i32, i32) {
    %c0_i32 = arith.constant 0 : i32
    %c0_i32_0 = arith.constant 0 : i32
    return %arg0, %c0_i32 : i32, i32
  }
  func.func @transform_7(%arg0: i32) -> (i32, i32) {
    %c0_i32 = arith.constant 0 : i32
    %c0_i32_0 = arith.constant 0 : i32
    return %arg0, %c0_i32 : i32, i32
  }
}

</mosaic_0001>

<llo_original>
// kernel: tpu_custom_call.1
$region0: #{tpu_custom_call.1}
  #allocation0 [shape = 'u32[]', space=smem, size = 0x4, offset = 0x4, fixed_abs, tag = 'smem constant byte address 0x4 - core index']
  #allocation1 [shape = 'u32[144,128]{1,0:T(1,128)}', space=vmem, size = 0x12000, scoped, tag = 'internal scratch']
  #allocation2 [shape = 'f32[1,1]{1,0:T(1,128)S(1)}', space=vmem, size = 0x200, scoped, tag = 'scoped memory for tpu_custom_call.1']
  %s0 = inlined_call_operand.vmem [shape: f32[32,8,16], index: 0, kind: input, shape index: {}]
  %s1 = inlined_call_operand.vmem [shape: f32[32,32], index: 1, kind: input, shape index: {}]
  %s2 = inlined_call_operand.vmem [shape: f32[16,32], index: 2, kind: input, shape index: {}]
  %s3 = inlined_call_operand.vmem [shape: f32[1,32], index: 3, kind: input, shape index: {}]
  %s4 = inlined_call_operand.vmem [shape: f32[1,32], index: 4, kind: input, shape index: {}]
  %s5 = inlined_call_operand.<no memory space> [shape: f32[1,1], index: 5, kind: input, shape index: {}]
  %s6 = inlined_call_operand.hbm [shape: f32[32,32], index: 6, kind: output, shape index: {0}]
  %s7 = inlined_call_operand.vmem [shape: f32[32,8], index: 7, kind: output, shape index: {1}]
  %8 = xla_tuple %s6, %s7
  %s9 = sld [smem:[#allocation0]]
  $region65: #{tpu_custom_call.1} parent=0
    _
  %s11 = ssub.s32 1, %s9
  %s12 = scalar_select 0, %s11, %s9
  %v13 = vstv %s5
  %14 = vst [vmem:[#allocation2] sm:$0x1] %v13
  $region1: #{tpu_custom_call.1} parent=0
    #allocation3 [shape = 'u8[8192]{0}', space=vmem, size = 0x2000, scoped, tag = 'output window, operand 0']
    #allocation4 [shape = 's32[2]{0}', space=sflag, size = 0x8, scoped, tag = 'scoped memory for tpu_custom_call.1']
    %15 = vsyncpa [#allocation4], 0
    %s16 = scalar_lea.sflag [#allocation4], 1
    %17 = vsyncpa %s16, 0
    loop: start=0, step=1, limit=6
    $region2: #{tpu_custom_call.1} parent=1 // loop_pre_header
      _
    $region3: #{tpu_custom_call.1} parent=1 // loop_header
      %s19 = sphi 0, %s23
      %p20 = scmp.ge.s32.totalorder %s19, 6
      %s29 = sphi 0, %s31
      %s32 = sphi 0, %s29
      %s33 = sphi 0, %s32
      %s49 = sphi 0, %s33
      %s55 = sphi 0, %s57
      %s58 = sphi 0, %s55
      %s59 = sphi 0, %s58
      %s75 = sphi 0, %s59
      %s79 = sphi 0, %s79
      %s81 = sphi 0, %s79
      %s82 = sphi 0, %s81
      %s96 = sphi 0, %s82
      %s100 = sphi 0, %s100
      %s102 = sphi 0, %s100
      %s103 = sphi 0, %s102
      %s117 = sphi 0, %s103
      %s121 = sphi 0, %s121
      %s123 = sphi 0, %s121
      %s124 = sphi 0, %s123
      %s138 = sphi 0, %s124
      %s142 = sphi 0, %s142
      %s144 = sphi 0, %s142
      %s145 = sphi 0, %s144
      %s159 = sphi 0, %s145
      %s165 = sphi 0, %s167
      %s168 = sphi 0, %s165
      %s169 = sphi 0, %s168
      %s185 = sphi 0, %s169
      %s191 = sphi 0, %s193
      %s194 = sphi 0, %s191
      %s195 = sphi 0, %s194
      %s211 = sphi 0, %s195
    $region4: #{tpu_custom_call.1} parent=1 // loop_header_branch
      %22 = sbr.rel (%p20) target = $region8
    $region5: #{tpu_custom_call.1} parent=1 // loop_body
      %s24 = ssub.s32 %s19, 1
      %s25 = ssub.s32 %s19, 2
      %s26 = sadd.s32 %s19, 1
      %s27 = ssub.s32 %s19, %s26
      %p28 = scmp.eq.s32.totalorder %s27, 0
      %s30 = sadd.s32 %s29, 1
      %s31 = scalar_select %p28, %s29, %s30
      %p34 = pneg %p28
      %p35 = scmp.eq.s32.totalorder %s19, 3
      %p36 = por %p34, %p35
      %p37 = scmp.ne.s32.totalorder %s29, %s32
      %p38 = scmp.eq.s32.totalorder %s19, 0
      %p39 = por %p37, %p38
      %p40 = scmp.ne.s32.totalorder %s29, %s32
      %p41 = scmp.eq.s32.totalorder %s24, 3
      %p42 = por %p40, %p41
      %p43 = scmp.ne.s32.totalorder %s32, %s33
      %p44 = scmp.eq.s32.totalorder %s24, 0
      %p45 = por %p43, %p44
      %p46 = scmp.ne.s32.totalorder %s32, %s33
      %p47 = scmp.eq.s32.totalorder %s25, 3
      %p48 = por %p46, %p47
      %p50 = scmp.ne.s32.totalorder %s33, %s49
      %p51 = scmp.eq.s32.totalorder %s25, 0
      %p52 = por %p50, %p51
      %s53 = ssub.s32 %s19, %s26
      %p54 = scmp.eq.s32.totalorder %s53, 0
      %s56 = sadd.s32 %s55, 1
      %s57 = scalar_select %p54, %s55, %s56
      %p60 = pneg %p54
      %p61 = scmp.eq.s32.totalorder %s19, 3
      %p62 = por %p60, %p61
      %p63 = scmp.ne.s32.totalorder %s55, %s58
      %p64 = scmp.eq.s32.totalorder %s19, 0
      %p65 = por %p63, %p64
      %p66 = scmp.ne.s32.totalorder %s55, %s58
      %p67 = scmp.eq.s32.totalorder %s24, 3
      %p68 = por %p66, %p67
      %p69 = scmp.ne.s32.totalorder %s58, %s59
      %p70 = scmp.eq.s32.totalorder %s24, 0
      %p71 = por %p69, %p70
      %p72 = scmp.ne.s32.totalorder %s58, %s59
      %p73 = scmp.eq.s32.totalorder %s25, 3
      %p74 = por %p72, %p73
      %p76 = scmp.ne.s32.totalorder %s59, %s75
      %p77 = scmp.eq.s32.totalorder %s25, 0
      %p78 = por %p76, %p77
      %s80 = sadd.s32 %s79, 1
      %p83 = scmp.eq.s32.totalorder %s19, 3
      %p84 = scmp.ne.s32.totalorder %s79, %s81
      %p85 = scmp.eq.s32.totalorder %s19, 0
      %p86 = por %p84, %p85
      %p87 = scmp.ne.s32.totalorder %s79, %s81
      %p88 = scmp.eq.s32.totalorder %s24, 3
      %p89 = por %p87, %p88
      %p90 = scmp.ne.s32.totalorder %s81, %s82
      %p91 = scmp.eq.s32.totalorder %s24, 0
      %p92 = por %p90, %p91
      %p93 = scmp.ne.s32.totalorder %s81, %s82
      %p94 = scmp.eq.s32.totalorder %s25, 3
      %p95 = por %p93, %p94
      %p97 = scmp.ne.s32.totalorder %s82, %s96
      %p98 = scmp.eq.s32.totalorder %s25, 0
      %p99 = por %p97, %p98
      %s101 = sadd.s32 %s100, 1
      %p104 = scmp.eq.s32.totalorder %s19, 3
      %p105 = scmp.ne.s32.totalorder %s100, %s102
      %p106 = scmp.eq.s32.totalorder %s19, 0
      %p107 = por %p105, %p106
      %p108 = scmp.ne.s32.totalorder %s100, %s102
      %p109 = scmp.eq.s32.totalorder %s24, 3
      %p110 = por %p108, %p109
      %p111 = scmp.ne.s32.totalorder %s102, %s103
      %p112 = scmp.eq.s32.totalorder %s24, 0
      %p113 = por %p111, %p112
      %p114 = scmp.ne.s32.totalorder %s102, %s103
      %p115 = scmp.eq.s32.totalorder %s25, 3
      %p116 = por %p114, %p115
      %p118 = scmp.ne.s32.totalorder %s103, %s117
      %p119 = scmp.eq.s32.totalorder %s25, 0
      %p120 = por %p118, %p119
      %s122 = sadd.s32 %s121, 1
      %p125 = scmp.eq.s32.totalorder %s19, 3
      %p126 = scmp.ne.s32.totalorder %s121, %s123
      %p127 = scmp.eq.s32.totalorder %s19, 0
      %p128 = por %p126, %p127
      %p129 = scmp.ne.s32.totalorder %s121, %s123
      %p130 = scmp.eq.s32.totalorder %s24, 3
      %p131 = por %p129, %p130
      %p132 = scmp.ne.s32.totalorder %s123, %s124
      %p133 = scmp.eq.s32.totalorder %s24, 0
      %p134 = por %p132, %p133
      %p135 = scmp.ne.s32.totalorder %s123, %s124
      %p136 = scmp.eq.s32.totalorder %s25, 3
      %p137 = por %p135, %p136
      %p139 = scmp.ne.s32.totalorder %s124, %s138
      %p140 = scmp.eq.s32.totalorder %s25, 0
      %p141 = por %p139, %p140
      %s143 = sadd.s32 %s142, 1
      %p146 = scmp.eq.s32.totalorder %s19, 3
      %p147 = scmp.ne.s32.totalorder %s142, %s144
      %p148 = scmp.eq.s32.totalorder %s19, 0
      %p149 = por %p147, %p148
      %p150 = scmp.ne.s32.totalorder %s142, %s144
      %p151 = scmp.eq.s32.totalorder %s24, 3
      %p152 = por %p150, %p151
      %p153 = scmp.ne.s32.totalorder %s144, %s145
      %p154 = scmp.eq.s32.totalorder %s24, 0
      %p155 = por %p153, %p154
      %p156 = scmp.ne.s32.totalorder %s144, %s145
      %p157 = scmp.eq.s32.totalorder %s25, 3
      %p158 = por %p156, %p157
      %p160 = scmp.ne.s32.totalorder %s145, %s159
      %p161 = scmp.eq.s32.totalorder %s25, 0
      %p162 = por %p160, %p161
      %s163 = ssub.s32 %s19, %s26
      %p164 = scmp.eq.s32.totalorder %s163, 0
      %s166 = sadd.s32 %s165, 1
      %s167 = scalar_select %p164, %s165, %s166
      %p170 = pneg %p164
      %p171 = scmp.eq.s32.totalorder %s19, 3
      %p172 = por %p170, %p171
      %p173 = scmp.ne.s32.totalorder %s165, %s168
      %p174 = scmp.eq.s32.totalorder %s19, 0
      %p175 = por %p173, %p174
      %p176 = scmp.ne.s32.totalorder %s165, %s168
      %p177 = scmp.eq.s32.totalorder %s24, 3
      %p178 = por %p176, %p177
      %p179 = scmp.ne.s32.totalorder %s168, %s169
      %p180 = scmp.eq.s32.totalorder %s24, 0
      %p181 = por %p179, %p180
      %p182 = scmp.ne.s32.totalorder %s168, %s169
      %p183 = scmp.eq.s32.totalorder %s25, 3
      %p184 = por %p182, %p183
      %p186 = scmp.ne.s32.totalorder %s169, %s185
      %p187 = scmp.eq.s32.totalorder %s25, 0
      %p188 = por %p186, %p187
      %s189 = ssub.s32 %s19, %s26
      %p190 = scmp.eq.s32.totalorder %s189, 0
      %s192 = sadd.s32 %s191, 1
      %s193 = scalar_select %p190, %s191, %s192
      %p196 = pneg %p190
      %p197 = scmp.eq.s32.totalorder %s19, 3
      %p198 = por %p196, %p197
      %p199 = scmp.ne.s32.totalorder %s191, %s194
      %p200 = scmp.eq.s32.totalorder %s19, 0
      %p201 = por %p199, %p200
      %p202 = scmp.ne.s32.totalorder %s191, %s194
      %p203 = scmp.eq.s32.totalorder %s24, 3
      %p204 = por %p202, %p203
      %p205 = scmp.ne.s32.totalorder %s194, %s195
      %p206 = scmp.eq.s32.totalorder %s24, 0
      %p207 = por %p205, %p206
      %p208 = scmp.ne.s32.totalorder %s194, %s195
      %p209 = scmp.eq.s32.totalorder %s25, 3
      %p210 = por %p208, %p209
      %p212 = scmp.ne.s32.totalorder %s195, %s211
      %p213 = scmp.eq.s32.totalorder %s25, 0
      %p214 = por %p212, %p213
      %p215 = scmp.le.s32.totalorder 1, %s19
      %p216 = scmp.lt.s32.totalorder %s19, 5
      %p217 = pnand %p215, %p216
      %p218 = pneg %p217
      // Predicated region
      $region9: #{tpu_custom_call.1} parent=5 // pred_check
        _
      $region10: #{tpu_custom_call.1} parent=5 // pred_check_branch
        %220 = sbr.rel (%p217) target = $region12
      $region11: #{tpu_custom_call.1} parent=5 // pred_region
        %s221 = ssub.s32 %s19, 1
        // Predicated region
        $region13: #{tpu_custom_call.1} parent=11 // pred_check
          %p222 = pneg %p92
        $region14: #{tpu_custom_call.1} parent=11 // pred_check_branch
          %224 = sbr.rel (%p222) target = $region16
        $region15: #{tpu_custom_call.1} parent=11 // pred_region
          _
        $region16: #{tpu_custom_call.1} parent=11 // pred_fallthru
          _
        // Predicated region
        $region17: #{tpu_custom_call.1} parent=11 // pred_check
          %p225 = pneg %p113
        $region18: #{tpu_custom_call.1} parent=11 // pred_check_branch
          %227 = sbr.rel (%p225) target = $region20
        $region19: #{tpu_custom_call.1} parent=11 // pred_region
          _
        $region20: #{tpu_custom_call.1} parent=11 // pred_fallthru
          _
        // Predicated region
        $region21: #{tpu_custom_call.1} parent=11 // pred_check
          %p228 = pneg %p134
        $region22: #{tpu_custom_call.1} parent=11 // pred_check_branch
          %230 = sbr.rel (%p228) target = $region24
        $region23: #{tpu_custom_call.1} parent=11 // pred_region
          _
        $region24: #{tpu_custom_call.1} parent=11 // pred_fallthru
          _
        // Predicated region
        $region25: #{tpu_custom_call.1} parent=11 // pred_check
          %p231 = pneg %p155
        $region26: #{tpu_custom_call.1} parent=11 // pred_check_branch
          %233 = sbr.rel (%p231) target = $region28
        $region27: #{tpu_custom_call.1} parent=11 // pred_region
          _
        $region28: #{tpu_custom_call.1} parent=11 // pred_fallthru
          _
      $region12: #{tpu_custom_call.1} parent=5 // pred_fallthru
        _
      %p234 = scmp.lt.s32.totalorder %s19, 4
      // Predicated region
      $region29: #{tpu_custom_call.1} parent=5 // pred_check
        %p235 = pneg %p234
      $region30: #{tpu_custom_call.1} parent=5 // pred_check_branch
        %237 = sbr.rel (%p235) target = $region32
      $region31: #{tpu_custom_call.1} parent=5 // pred_region
        // Predicated region
        $region33: #{tpu_custom_call.1} parent=31 // pred_check
          %p238 = pneg %p39
        $region34: #{tpu_custom_call.1} parent=31 // pred_check_branch
          %240 = sbr.rel (%p238) target = $region36
        $region35: #{tpu_custom_call.1} parent=31 // pred_region
          %s241 = smul.u32 8, %s19
          %p242 = scmp.lt.s32.totalorder %s241, 31
          %s243 = scalar_select %p242, %s241, 31
          %s244 = smul.addr %s243, 8
          %s245 = scalar_lea.vmem %s0, %s244
          %s246 = smul.u32 8, %s19
        $region36: #{tpu_custom_call.1} parent=31 // pred_fallthru
          _
        // Predicated region
        $region37: #{tpu_custom_call.1} parent=31 // pred_check
          %p247 = pneg %p65
        $region38: #{tpu_custom_call.1} parent=31 // pred_check_branch
          %249 = sbr.rel (%p247) target = $region40
        $region39: #{tpu_custom_call.1} parent=31 // pred_region
          %p250 = scmp.lt.s32.totalorder %s19, 3
          %s251 = scalar_select %p250, %s19, 3
          %s252 = smul.addr %s251, 8
          %s253 = scalar_lea.vmem %s1, %s252
        $region40: #{tpu_custom_call.1} parent=31 // pred_fallthru
          _
      $region32: #{tpu_custom_call.1} parent=5 // pred_fallthru
        _
      %p254 = scmp.le.s32.totalorder 1, %s19
      %p255 = scmp.lt.s32.totalorder %s19, 5
      %p256 = pnand %p254, %p255
      %p257 = pneg %p256
      // Predicated region
      $region41: #{tpu_custom_call.1} parent=5 // pred_check
        _
      $region42: #{tpu_custom_call.1} parent=5 // pred_check_branch
        %259 = sbr.rel (%p256) target = $region44
      $region43: #{tpu_custom_call.1} parent=5 // pred_region
        %s260 = ssub.s32 %s19, 1
        %s261 = smul.u32 8, %s24
        %p262 = scmp.lt.s32.totalorder %s261, 31
        %s263 = scalar_select %p262, %s261, 31
        %s264 = smul.addr %s263, 8
        %s265 = scalar_lea.vmem %s0, %s264
        %p266 = pneg %p45
        %p267 = pneg %p42
        %p268 = scmp.lt.s32.totalorder %s24, 3
        %s269 = scalar_select %p268, %s24, 3
        %s270 = smul.addr %s269, 8
        %s271 = scalar_lea.vmem %s1, %s270
        %p272 = pneg %p71
        %p273 = pneg %p68
        %p274 = pneg %p92
        %p275 = pneg %p89
        %p276 = pneg %p113
        %p277 = pneg %p110
        %p278 = pneg %p134
        %p279 = pneg %p131
        %p280 = pneg %p155
        %p281 = pneg %p152
        %p282 = pneg %p181
        %p283 = pneg %p178
        %s284 = sand.u32 %s168, 1
        %s285 = scalar_lea.sflag [#allocation4], %s284
        %s286 = sand.u32 %s168, 1
        %s287 = smul.addr %s286, 8
        %s288 = scalar_lea.vmem [#allocation3], %s287
        %p289 = pneg %p207
        %p290 = pneg %p204
        %p291 = scmp.lt.s32.totalorder %s24, 3
        %s292 = scalar_select %p291, %s24, 3
        %s293 = smul.addr %s292, 8
        %s294 = scalar_lea.vmem %s7, %s293
        %s295 = smul.u32 8, %s24
        %p296 = scmp.lt.s32.totalorder %s295, 31
        %s297 = scalar_select %p296, %s295, 31
        %s298 = smul.addr %s297, 8
        %s299 = scalar_lea.vmem %s0, %s298
        %s300 = smul.u32 8, %s24
        %p301 = scmp.lt.s32.totalorder %s24, 3
        %s302 = scalar_select %p301, %s24, 3
        %s303 = smul.addr %s302, 8
        %s304 = scalar_lea.vmem %s1, %s303
        %p305 = scmp.lt.s32.totalorder %s24, 3
        %s306 = scalar_select %p305, %s24, 3
        %s307 = smul.addr %s306, 8
        %s308 = scalar_lea.vmem %s7, %s307
        %v309 = vld [vmem:[%s299] sm:$0xff]
        %v310 = vld [vmem:[%s299 + $0x8] sm:$0xff]
        %v311 = vld [vmem:[%s299 + $0x10] sm:$0xff]
        %v312 = vld [vmem:[%s299 + $0x18] sm:$0xff]
        %v313 = vld [vmem:[%s299 + $0x20] sm:$0xff]
        %v314 = vld [vmem:[%s299 + $0x28] sm:$0xff]
        %v315 = vld [vmem:[%s299 + $0x30] sm:$0xff]
        %v316 = vld [vmem:[%s299 + $0x38] sm:$0xff]
        %v317 = vld [vmem:[%s2] sm:$0xff]
        %v318 = vld [vmem:[%s2 + $0x8] sm:$0xff]
        %vm319 = vcmask 130048
        %v321 = vsel %vm319, %v309, 0
        %v324 = vsel %vm319, %v310, 0
        %v327 = vsel %vm319, %v311, 0
        %v330 = vsel %vm319, %v312, 0
        %v333 = vsel %vm319, %v313, 0
        %v336 = vsel %vm319, %v314, 0
        %v339 = vsel %vm319, %v315, 0
        %v342 = vsel %vm319, %v316, 0
        %344 = vmatprep.subr.mxu0 0.0
        %345 = vmatpush1.msra.mxu0 0.0
        %346 = vmatprep.subr.mxu0 0.0
        %347 = vmatpush1.msra.mxu0 0.0
        %348 = vmatprep.subr.mxu0 0.0
        %349 = vmatpush1.msra.mxu0 0.0
        %350 = vmatprep.subr.mxu0 0.0
        %351 = vmatpush1.msra.mxu0 0.0
        %352 = vmatprep.subr.mxu0 0.0
        %353 = vmatpush1.msra.mxu0 0.0
        %354 = vmatprep.subr.mxu0 0.0
        %355 = vmatpush1.msra.mxu0 0.0
        %356 = vmatprep.subr.mxu0 0.0
        %357 = vmatpush1.msra.mxu0 0.0
        %358 = vmatprep.subr.mxu0 0.0
        %359 = vmatpush1.msra.mxu0 0.0
        %360 = vmatprep.subr.mxu0 0.0
        %361 = vmatpush1.msra.mxu0 0.0
        %362 = vmatprep.subr.mxu0 0.0
        %363 = vmatpush1.msra.mxu0 0.0
        %364 = vmatprep.subr.mxu0 0.0
        %365 = vmatpush1.msra.mxu0 0.0
        %366 = vmatprep.subr.mxu0 0.0
        %367 = vmatpush1.msra.mxu0 0.0
        %368 = vmatprep.subr.mxu0 0.0
        %369 = vmatpush1.msra.mxu0 0.0
        %370 = vmatprep.subr.mxu0 0.0
        %371 = vmatpush1.msra.mxu0 0.0
        %372 = vmatprep.subr.mxu0 0.0
        %373 = vmatpush1.msra.mxu0 %v318
        %374 = vmatprep.subr.mxu0 0.0
        %375 = vmatpush1.msra.mxu0 %v317
        %376 = vmatprep.subr.mxu0 0.0
        %377 = vmatpush2.msra.mxu0 0.0
        %378 = vmatprep.subr.mxu0 0.0
        %379 = vmatpush2.msra.mxu0 0.0
        %380 = vmatprep.subr.mxu0 0.0
        %381 = vmatpush2.msra.mxu0 0.0
        %382 = vmatprep.subr.mxu0 0.0
        %383 = vmatpush2.msra.mxu0 0.0
        %384 = vmatprep.subr.mxu0 0.0
        %385 = vmatpush2.msra.mxu0 0.0
        %386 = vmatprep.subr.mxu0 0.0
        %387 = vmatpush2.msra.mxu0 0.0
        %388 = vmatprep.subr.mxu0 0.0
        %389 = vmatpush2.msra.mxu0 0.0
        %390 = vmatprep.subr.mxu0 0.0
        %391 = vmatpush2.msra.mxu0 0.0
        %392 = vmatprep.subr.mxu0 0.0
        %393 = vmatpush2.msra.mxu0 0.0
        %394 = vmatprep.subr.mxu0 0.0
        %395 = vmatpush2.msra.mxu0 0.0
        %396 = vmatprep.subr.mxu0 0.0
        %397 = vmatpush2.msra.mxu0 0.0
        %398 = vmatprep.subr.mxu0 0.0
        %399 = vmatpush2.msra.mxu0 0.0
        %400 = vmatprep.subr.mxu0 0.0
        %401 = vmatpush2.msra.mxu0 0.0
        %402 = vmatprep.subr.mxu0 0.0
        %403 = vmatpush2.msra.mxu0 0.0
        %404 = vmatprep.subr.mxu0 0.0
        %405 = vmatpush2.msra.mxu0 0.0
        %406 = vmatprep.subr.mxu0 0.0
        %407 = vmatpush2.msra.mxu0 0.0
        %408 = vmatprep.mubr.f32.mxu0 0.0
        %409 = vmatmul.mubr.f32.gmra.mxu0 %v321
        %v410 = vpop.f32.mrf.mxu0
        %v411 = vadd.f32 0.0, %v410
        %v412 = vpop.f32.mrf.mxu0
        %413 = vmatprep.mubr.f32.mxu0 0.0
        %414 = vmatmul.mubr.f32.gmra.mxu0 %v324
        %v415 = vpop.f32.mrf.mxu0
        %v416 = vadd.f32 0.0, %v415
        %v417 = vpop.f32.mrf.mxu0
        %418 = vmatprep.mubr.f32.mxu0 0.0
        %419 = vmatmul.mubr.f32.gmra.mxu0 %v327
        %v420 = vpop.f32.mrf.mxu0
        %v421 = vadd.f32 0.0, %v420
        %v422 = vpop.f32.mrf.mxu0
        %423 = vmatprep.mubr.f32.mxu0 0.0
        %424 = vmatmul.mubr.f32.gmra.mxu0 %v330
        %v425 = vpop.f32.mrf.mxu0
        %v426 = vadd.f32 0.0, %v425
        %v427 = vpop.f32.mrf.mxu0
        %428 = vmatprep.mubr.f32.mxu0 0.0
        %429 = vmatmul.mubr.f32.gmra.mxu0 %v333
        %v430 = vpop.f32.mrf.mxu0
        %v431 = vadd.f32 0.0, %v430
        %v432 = vpop.f32.mrf.mxu0
        %433 = vmatprep.mubr.f32.mxu0 0.0
        %434 = vmatmul.mubr.f32.gmra.mxu0 %v336
        %v435 = vpop.f32.mrf.mxu0
        %v436 = vadd.f32 0.0, %v435
        %v437 = vpop.f32.mrf.mxu0
        %438 = vmatprep.mubr.f32.mxu0 0.0
        %439 = vmatmul.mubr.f32.gmra.mxu0 %v339
        %v440 = vpop.f32.mrf.mxu0
        %v441 = vadd.f32 0.0, %v440
        %v442 = vpop.f32.mrf.mxu0
        %443 = vmatprep.mubr.f32.mxu0 0.0
        %444 = vmatmul.mubr.f32.gmra.mxu0 %v342
        %v445 = vpop.f32.mrf.mxu0
        %v446 = vadd.f32 0.0, %v445
        %v447 = vpop.f32.mrf.mxu0
        %448 = vdwg.mxu0
        %v449 = vld [vmem:[%s304] sm:$0xff]
        %v451 = vcombine.high %v449, %v449
        %v453 = vunpack.c.l.s4 1966171168
        %v454 = vunpack.c.0.s8 %v453
        %v455 = vlaneseq
        %v456 = vshrl.u32 %v455, 7
        %v457 = vsub.s32 %v454, %v456
        %v458 = vrot.slane %v449, %v457
        %v460 = vunpack.c.l.s4 1966171168
        %v461 = vunpack.c.0.s8 %v460
        %v462 = vlaneseq
        %v463 = vshrl.u32 %v462, 7
        %v464 = vsub.s32 %v461, %v463
        %v465 = vrot.slane %v451, %v464
        %v466 = vcombine.high %v458, %v458
        %v467 = vcombine.high %v465, %v465
        %v469 = vunpack.c.l.s4 1966171168
        %v470 = vunpack.c.0.s8 %v469
        %v471 = vlaneseq
        %v472 = vshrl.u32 %v471, 7
        %v473 = vsub.s32 %v470, %v472
        %v474 = vrot.slane %v458, %v473
        %v476 = vunpack.c.l.s4 1966171168
        %v477 = vunpack.c.0.s8 %v476
        %v478 = vlaneseq
        %v479 = vshrl.u32 %v478, 7
        %v480 = vsub.s32 %v477, %v479
        %v481 = vrot.slane %v465, %v480
        %v483 = vunpack.c.l.s4 1966171168
        %v484 = vunpack.c.0.s8 %v483
        %v485 = vlaneseq
        %v486 = vshrl.u32 %v485, 7
        %v487 = vsub.s32 %v484, %v486
        %v488 = vrot.slane %v466, %v487
        %v490 = vunpack.c.l.s4 1966171168
        %v491 = vunpack.c.0.s8 %v490
        %v492 = vlaneseq
        %v493 = vshrl.u32 %v492, 7
        %v494 = vsub.s32 %v491, %v493
        %v495 = vrot.slane %v467, %v494
        %v496 = vcombine.high %v474, %v474
        %v497 = vcombine.high %v481, %v481
        %v498 = vcombine.high %v488, %v488
        %v499 = vcombine.high %v495, %v495
        %v500 = vlaneseq
        %v501 = vshrl.u32 %v500, 7
        %v502 = vsub.s32 0, %v501
        %v503 = vrot.slane %v474, %v502
        %v504 = vlaneseq
        %v505 = vshrl.u32 %v504, 7
        %v506 = vsub.s32 0, %v505
        %v507 = vrot.slane %v488, %v506
        %v508 = vlaneseq
        %v509 = vshrl.u32 %v508, 7
        %v510 = vsub.s32 0, %v509
        %v511 = vrot.slane %v496, %v510
        %v512 = vlaneseq
        %v513 = vshrl.u32 %v512, 7
        %v514 = vsub.s32 0, %v513
        %v515 = vrot.slane %v498, %v514
        %v516 = vlaneseq
        %v517 = vshrl.u32 %v516, 7
        %v518 = vsub.s32 0, %v517
        %v519 = vrot.slane %v481, %v518
        %v520 = vlaneseq
        %v521 = vshrl.u32 %v520, 7
        %v522 = vsub.s32 0, %v521
        %v523 = vrot.slane %v495, %v522
        %v524 = vlaneseq
        %v525 = vshrl.u32 %v524, 7
        %v526 = vsub.s32 0, %v525
        %v527 = vrot.slane %v497, %v526
        %v528 = vlaneseq
        %v529 = vshrl.u32 %v528, 7
        %v530 = vsub.s32 0, %v529
        %v531 = vrot.slane %v499, %v530
        %v540 = vadd.f32 %v411, %v503
        %v541 = vadd.f32 %v416, %v507
        %v542 = vadd.f32 %v421, %v511
        %v543 = vadd.f32 %v426, %v515
        %v544 = vadd.f32 %v431, %v519
        %v545 = vadd.f32 %v436, %v523
        %v546 = vadd.f32 %v441, %v527
        %v547 = vadd.f32 %v446, %v531
        %v548 = vtanh.pop %v540
        %v549 = vtanh.pop %v541
        %v550 = vtanh.pop %v542
        %v551 = vtanh.pop %v543
        %v552 = vtanh.pop %v544
        %v553 = vtanh.pop %v545
        %v554 = vtanh.pop %v546
        %v555 = vtanh.pop %v547
        %v556 = vld [vmem:[%s4] sm:$0x1]
        %v558 = vlaneseq
        %v559 = vshrl.u32 %v558, 7
        %v560 = vsub.s32 0, %v559
        %v561 = vrot.slane %v556, %v560
        %v563 = vmul.f32 %v548, %v561
        %v564 = vmul.f32 %v549, %v561
        %v565 = vmul.f32 %v550, %v561
        %v566 = vmul.f32 %v551, %v561
        %v567 = vmul.f32 %v552, %v561
        %v568 = vmul.f32 %v553, %v561
        %v569 = vmul.f32 %v554, %v561
        %v570 = vmul.f32 %v555, %v561
        %vm571 = vcmask 261120
        %v572 = vsel %vm571, %v563, 0.0
        %573 = vadd.xlane.f32.xlu0 %v572
        %v574 = vpop.xlane.xlu0 %573
        %v575 = vsel %vm571, %v564, 0.0
        %576 = vadd.xlane.f32.xlu0 %v575
        %v577 = vpop.xlane.xlu0 %576
        %v578 = vsel %vm571, %v565, 0.0
        %579 = vadd.xlane.f32.xlu0 %v578
        %v580 = vpop.xlane.xlu0 %579
        %v581 = vsel %vm571, %v566, 0.0
        %582 = vadd.xlane.f32.xlu0 %v581
        %v583 = vpop.xlane.xlu0 %582
        %v584 = vsel %vm571, %v567, 0.0
        %585 = vadd.xlane.f32.xlu0 %v584
        %v586 = vpop.xlane.xlu0 %585
        %v587 = vsel %vm571, %v568, 0.0
        %588 = vadd.xlane.f32.xlu0 %v587
        %v589 = vpop.xlane.xlu0 %588
        %v590 = vsel %vm571, %v569, 0.0
        %591 = vadd.xlane.f32.xlu0 %v590
        %v592 = vpop.xlane.xlu0 %591
        %v593 = vsel %vm571, %v570, 0.0
        %594 = vadd.xlane.f32.xlu0 %v593
        %v595 = vpop.xlane.xlu0 %594
        %v596 = vld [vmem:[#allocation2] sm:$0x1]
        %v598 = vlaneseq
        %v599 = vshrl.u32 %v598, 7
        %v600 = vsub.s32 0, %v599
        %v601 = vrot.slane %v596, %v600
        %602 = vset.pattern.permute.xlu0 0
        %603 = vperm.xlu0 %602, %v601
        %v604 = vpop.permute.xlu0 %603
        %v606 = vadd.f32 %v574, %v604
        %v607 = vadd.f32 %v577, %v604
        %v608 = vadd.f32 %v580, %v604
        %v609 = vadd.f32 %v583, %v604
        %v610 = vadd.f32 %v586, %v604
        %v611 = vadd.f32 %v589, %v604
        %v612 = vadd.f32 %v592, %v604
        %v613 = vadd.f32 %v595, %v604
        %v622 = vlaneseq
        %v623 = vand.u32 %v622, 127
        %v624 = vlaneseq
        %v625 = vshrl.u32 %v624, 7
        %v626 = vsub.s32 %v623, %v625
        %v627 = vrot.slane %v606, %v626
        %v628 = vlaneseq
        %v629 = vshrl.u32 %v628, 7
        %v630 = vsub.s32 %v623, %v629
        %v631 = vrot.slane %v607, %v630
        %v632 = vlaneseq
        %v633 = vshrl.u32 %v632, 7
        %v634 = vsub.s32 %v623, %v633
        %v635 = vrot.slane %v608, %v634
        %v636 = vlaneseq
        %v637 = vshrl.u32 %v636, 7
        %v638 = vsub.s32 %v623, %v637
        %v639 = vrot.slane %v609, %v638
        %v640 = vlaneseq
        %v641 = vshrl.u32 %v640, 7
        %v642 = vsub.s32 %v623, %v641
        %v643 = vrot.slane %v610, %v642
        %v644 = vlaneseq
        %v645 = vshrl.u32 %v644, 7
        %v646 = vsub.s32 %v623, %v645
        %v647 = vrot.slane %v611, %v646
        %v648 = vlaneseq
        %v649 = vshrl.u32 %v648, 7
        %v650 = vsub.s32 %v623, %v649
        %v651 = vrot.slane %v612, %v650
        %v652 = vlaneseq
        %v653 = vshrl.u32 %v652, 7
        %v654 = vsub.s32 %v623, %v653
        %v655 = vrot.slane %v613, %v654
        %vm656 = vcmask 1041409
        %v657 = vsel %vm656, %v631, %v627
        %vm658 = vcmask 1042434
        %v659 = vsel %vm658, %v635, %v657
        %vm660 = vcmask 1043459
        %v661 = vsel %vm660, %v639, %v659
        %vm662 = vcmask 1044484
        %v663 = vsel %vm662, %v643, %v661
        %vm664 = vcmask 1045509
        %v665 = vsel %vm664, %v647, %v663
        %vm666 = vcmask 1046534
        %v667 = vsel %vm666, %v651, %v665
        %vm668 = vcmask 1047559
        %v669 = vsel %vm668, %v655, %v667
        %vm671 = vcmask 64512
        %v672 = vsel %vm671, %v669, -inf
        %673 = vmax.xlane.f32.xlu0 %v672
        %v674 = vpop.xlane.xlu0 %673
        %v676 = vlaneseq
        %v677 = vshrl.u32 %v676, 7
        %v678 = vsub.s32 0, %v677
        %v679 = vrot.slane %v674, %v678
        %v680 = vlaneseq
        %v681 = vshrl.u32 %v680, 7
        %v682 = vsub.s32 1, %v681
        %v683 = vrot.slane %v674, %v682
        %v684 = vlaneseq
        %v685 = vshrl.u32 %v684, 7
        %v686 = vsub.s32 2, %v685
        %v687 = vrot.slane %v674, %v686
        %v688 = vlaneseq
        %v689 = vshrl.u32 %v688, 7
        %v690 = vsub.s32 3, %v689
        %v691 = vrot.slane %v674, %v690
        %v692 = vlaneseq
        %v693 = vshrl.u32 %v692, 7
        %v694 = vsub.s32 4, %v693
        %v695 = vrot.slane %v674, %v694
        %v696 = vlaneseq
        %v697 = vshrl.u32 %v696, 7
        %v698 = vsub.s32 5, %v697
        %v699 = vrot.slane %v674, %v698
        %v700 = vlaneseq
        %v701 = vshrl.u32 %v700, 7
        %v702 = vsub.s32 6, %v701
        %v703 = vrot.slane %v674, %v702
        %v704 = vlaneseq
        %v705 = vshrl.u32 %v704, 7
        %v706 = vsub.s32 7, %v705
        %v707 = vrot.slane %v674, %v706
        %v716 = vsub.f32 %v606, %v679
        %v717 = vsub.f32 %v607, %v683
        %v718 = vsub.f32 %v608, %v687
        %v719 = vsub.f32 %v609, %v691
        %v720 = vsub.f32 %v610, %v695
        %v721 = vsub.f32 %v611, %v699
        %v722 = vsub.f32 %v612, %v703
        %v723 = vsub.f32 %v613, %v707
        %v724 = vmul.f32 %v716, 1.442695
        %v725 = vpow.pop %v724
        %v726 = vmul.f32 %v717, 1.442695
        %v727 = vpow.pop %v726
        %v728 = vmul.f32 %v718, 1.442695
        %v729 = vpow.pop %v728
        %v730 = vmul.f32 %v719, 1.442695
        %v731 = vpow.pop %v730
        %v732 = vmul.f32 %v720, 1.442695
        %v733 = vpow.pop %v732
        %v734 = vmul.f32 %v721, 1.442695
        %v735 = vpow.pop %v734
        %v736 = vmul.f32 %v722, 1.442695
        %v737 = vpow.pop %v736
        %v738 = vmul.f32 %v723, 1.442695
        %v739 = vpow.pop %v738
        %748 = vset.pattern.permute.xlu0 0
        %749 = vperm.xlu0 %748, %v725
        %v750 = vpop.permute.xlu0 %749
        %751 = vset.pattern.permute.xlu0 0
        %752 = vperm.xlu0 %751, %v727
        %v753 = vpop.permute.xlu0 %752
        %754 = vset.pattern.permute.xlu0 0
        %755 = vperm.xlu0 %754, %v729
        %v756 = vpop.permute.xlu0 %755
        %757 = vset.pattern.permute.xlu0 0
        %758 = vperm.xlu0 %757, %v731
        %v759 = vpop.permute.xlu0 %758
        %760 = vset.pattern.permute.xlu0 0
        %761 = vperm.xlu0 %760, %v733
        %v762 = vpop.permute.xlu0 %761
        %763 = vset.pattern.permute.xlu0 0
        %764 = vperm.xlu0 %763, %v735
        %v765 = vpop.permute.xlu0 %764
        %766 = vset.pattern.permute.xlu0 0
        %767 = vperm.xlu0 %766, %v737
        %v768 = vpop.permute.xlu0 %767
        %769 = vset.pattern.permute.xlu0 0
        %770 = vperm.xlu0 %769, %v739
        %v771 = vpop.permute.xlu0 %770
        %v772 = vlaneseq
        %v773 = vshrl.u32 %v772, 7
        %v774 = vsub.s32 %v623, %v773
        %v775 = vrot.slane %v750, %v774
        %v776 = vlaneseq
        %v777 = vshrl.u32 %v776, 7
        %v778 = vsub.s32 %v623, %v777
        %v779 = vrot.slane %v753, %v778
        %v780 = vlaneseq
        %v781 = vshrl.u32 %v780, 7
        %v782 = vsub.s32 %v623, %v781
        %v783 = vrot.slane %v756, %v782
        %v784 = vlaneseq
        %v785 = vshrl.u32 %v784, 7
        %v786 = vsub.s32 %v623, %v785
        %v787 = vrot.slane %v759, %v786
        %v788 = vlaneseq
        %v789 = vshrl.u32 %v788, 7
        %v790 = vsub.s32 %v623, %v789
        %v791 = vrot.slane %v762, %v790
        %v792 = vlaneseq
        %v793 = vshrl.u32 %v792, 7
        %v794 = vsub.s32 %v623, %v793
        %v795 = vrot.slane %v765, %v794
        %v796 = vlaneseq
        %v797 = vshrl.u32 %v796, 7
        %v798 = vsub.s32 %v623, %v797
        %v799 = vrot.slane %v768, %v798
        %v800 = vlaneseq
        %v801 = vshrl.u32 %v800, 7
        %v802 = vsub.s32 %v623, %v801
        %v803 = vrot.slane %v771, %v802
        %v804 = vsel %vm656, %v779, %v775
        %v805 = vsel %vm658, %v783, %v804
        %v806 = vsel %vm660, %v787, %v805
        %v807 = vsel %vm662, %v791, %v806
        %v808 = vsel %vm664, %v795, %v807
        %v809 = vsel %vm666, %v799, %v808
        %v810 = vsel %vm668, %v803, %v809
        %v812 = vsel %vm671, %v810, 0.0
        %813 = vadd.xlane.f32.xlu0 %v812
        %v814 = vpop.xlane.xlu0 %813
        %v815 = vrcp.pop %v814
        %v816 = vmul.f32 %v814, %v815
        %v817 = vsub.f32 2.0, %v816
        %v818 = vmul.f32 %v815, %v817
        %v820 = vlaneseq
        %v821 = vshrl.u32 %v820, 7
        %v822 = vsub.s32 0, %v821
        %v823 = vrot.slane %v818, %v822
        %v824 = vlaneseq
        %v825 = vshrl.u32 %v824, 7
        %v826 = vsub.s32 1, %v825
        %v827 = vrot.slane %v818, %v826
        %v828 = vlaneseq
        %v829 = vshrl.u32 %v828, 7
        %v830 = vsub.s32 2, %v829
        %v831 = vrot.slane %v818, %v830
        %v832 = vlaneseq
        %v833 = vshrl.u32 %v832, 7
        %v834 = vsub.s32 3, %v833
        %v835 = vrot.slane %v818, %v834
        %v836 = vlaneseq
        %v837 = vshrl.u32 %v836, 7
        %v838 = vsub.s32 4, %v837
        %v839 = vrot.slane %v818, %v838
        %v840 = vlaneseq
        %v841 = vshrl.u32 %v840, 7
        %v842 = vsub.s32 5, %v841
        %v843 = vrot.slane %v818, %v842
        %v844 = vlaneseq
        %v845 = vshrl.u32 %v844, 7
        %v846 = vsub.s32 6, %v845
        %v847 = vrot.slane %v818, %v846
        %v848 = vlaneseq
        %v849 = vshrl.u32 %v848, 7
        %v850 = vsub.s32 7, %v849
        %v851 = vrot.slane %v818, %v850
        %v860 = vmul.f32 %v725, %v823
        %v861 = vmul.f32 %v727, %v827
        %v862 = vmul.f32 %v729, %v831
        %v863 = vmul.f32 %v731, %v835
        %v864 = vmul.f32 %v733, %v839
        %v865 = vmul.f32 %v735, %v843
        %v866 = vmul.f32 %v737, %v847
        %v867 = vmul.f32 %v739, %v851
        %869 = vset.pattern.permute.xlu0 0
        %870 = vperm.xlu0 %869, %v860
        %v871 = vpop.permute.xlu0 %870
        %874 = vset.pattern.permute.xlu0 0
        %875 = vperm.xlu0 %874, %v861
        %v876 = vpop.permute.xlu0 %875
        %879 = vset.pattern.permute.xlu0 0
        %880 = vperm.xlu0 %879, %v862
        %v881 = vpop.permute.xlu0 %880
        %884 = vset.pattern.permute.xlu0 0
        %885 = vperm.xlu0 %884, %v863
        %v886 = vpop.permute.xlu0 %885
        %889 = vset.pattern.permute.xlu0 0
        %890 = vperm.xlu0 %889, %v864
        %v891 = vpop.permute.xlu0 %890
        %894 = vset.pattern.permute.xlu0 0
        %895 = vperm.xlu0 %894, %v865
        %v896 = vpop.permute.xlu0 %895
        %899 = vset.pattern.permute.xlu0 0
        %900 = vperm.xlu0 %899, %v866
        %v901 = vpop.permute.xlu0 %900
        %904 = vset.pattern.permute.xlu0 0
        %905 = vperm.xlu0 %904, %v867
        %v906 = vpop.permute.xlu0 %905
        %v908 = vmul.f32 %v411, %v871
        %v909 = vmul.f32 %v416, %v876
        %v910 = vmul.f32 %v421, %v881
        %v911 = vmul.f32 %v426, %v886
        %v912 = vmul.f32 %v431, %v891
        %v913 = vmul.f32 %v436, %v896
        %v914 = vmul.f32 %v441, %v901
        %v915 = vmul.f32 %v446, %v906
        %v916 = vsel %vm571, %v908, 0.0
        %v917 = vrot.slane %v916, 4
        %v918 = vadd.f32 %v916, %v917
        %v919 = vrot.slane %v918, 2
        %v920 = vadd.f32 %v918, %v919
        %v921 = vrot.slane %v920, 1
        %v922 = vadd.f32 %v920, %v921
        %v923 = vsel %vm571, %v909, 0.0
        %v924 = vrot.slane %v923, 4
        %v925 = vadd.f32 %v923, %v924
        %v926 = vrot.slane %v925, 2
        %v927 = vadd.f32 %v925, %v926
        %v928 = vrot.slane %v927, 1
        %v929 = vadd.f32 %v927, %v928
        %v930 = vsel %vm571, %v910, 0.0
        %v931 = vrot.slane %v930, 4
        %v932 = vadd.f32 %v930, %v931
        %v933 = vrot.slane %v932, 2
        %v934 = vadd.f32 %v932, %v933
        %v935 = vrot.slane %v934, 1
        %v936 = vadd.f32 %v934, %v935
        %v937 = vsel %vm571, %v911, 0.0
        %v938 = vrot.slane %v937, 4
        %v939 = vadd.f32 %v937, %v938
        %v940 = vrot.slane %v939, 2
        %v941 = vadd.f32 %v939, %v940
        %v942 = vrot.slane %v941, 1
        %v943 = vadd.f32 %v941, %v942
        %v944 = vsel %vm571, %v912, 0.0
        %v945 = vrot.slane %v944, 4
        %v946 = vadd.f32 %v944, %v945
        %v947 = vrot.slane %v946, 2
        %v948 = vadd.f32 %v946, %v947
        %v949 = vrot.slane %v948, 1
        %v950 = vadd.f32 %v948, %v949
        %v951 = vsel %vm571, %v913, 0.0
        %v952 = vrot.slane %v951, 4
        %v953 = vadd.f32 %v951, %v952
        %v954 = vrot.slane %v953, 2
        %v955 = vadd.f32 %v953, %v954
        %v956 = vrot.slane %v955, 1
        %v957 = vadd.f32 %v955, %v956
        %v958 = vsel %vm571, %v914, 0.0
        %v959 = vrot.slane %v958, 4
        %v960 = vadd.f32 %v958, %v959
        %v961 = vrot.slane %v960, 2
        %v962 = vadd.f32 %v960, %v961
        %v963 = vrot.slane %v962, 1
        %v964 = vadd.f32 %v962, %v963
        %v965 = vsel %vm571, %v915, 0.0
        %v966 = vrot.slane %v965, 4
        %v967 = vadd.f32 %v965, %v966
        %v968 = vrot.slane %v967, 2
        %v969 = vadd.f32 %v967, %v968
        %v970 = vrot.slane %v969, 1
        %v971 = vadd.f32 %v969, %v970
        %v972 = vld [vmem:[%s3] sm:$0x1]
        %v974 = vlaneseq
        %v975 = vshrl.u32 %v974, 7
        %v976 = vsub.s32 0, %v975
        %v977 = vrot.slane %v972, %v976
        %v979 = vadd.f32 %v922, %v977
        %v980 = vadd.f32 %v929, %v977
        %v981 = vadd.f32 %v936, %v977
        %v982 = vadd.f32 %v943, %v977
        %v983 = vadd.f32 %v950, %v977
        %v984 = vadd.f32 %v957, %v977
        %v985 = vadd.f32 %v964, %v977
        %v986 = vadd.f32 %v971, %v977
        %v995 = vrot.slane %v980, 7
        %v996 = vsel %vm656, %v995, %v979
        %v997 = vrot.slane %v981, 6
        %v998 = vsel %vm658, %v997, %v996
        %v999 = vrot.slane %v982, 5
        %v1000 = vsel %vm660, %v999, %v998
        %v1001 = vrot.slane %v983, 4
        %v1002 = vsel %vm662, %v1001, %v1000
        %v1003 = vrot.slane %v984, 3
        %v1004 = vsel %vm664, %v1003, %v1002
        %v1005 = vrot.slane %v985, 2
        %v1006 = vsel %vm666, %v1005, %v1004
        %v1007 = vrot.slane %v986, 1
        %v1008 = vsel %vm668, %v1007, %v1006
        %1010 = vst.msk [vmem:[%s288] sm:$0xff] %vm571, %v1008
        %v1011 = vlaneseq
        %v1012 = vshrl.u32 %v1011, 7
        %v1013 = vsub.s32 %v623, %v1012
        %v1014 = vrot.slane %v871, %v1013
        %v1015 = vlaneseq
        %v1016 = vshrl.u32 %v1015, 7
        %v1017 = vsub.s32 %v623, %v1016
        %v1018 = vrot.slane %v876, %v1017
        %v1019 = vlaneseq
        %v1020 = vshrl.u32 %v1019, 7
        %v1021 = vsub.s32 %v623, %v1020
        %v1022 = vrot.slane %v881, %v1021
        %v1023 = vlaneseq
        %v1024 = vshrl.u32 %v1023, 7
        %v1025 = vsub.s32 %v623, %v1024
        %v1026 = vrot.slane %v886, %v1025
        %v1027 = vlaneseq
        %v1028 = vshrl.u32 %v1027, 7
        %v1029 = vsub.s32 %v623, %v1028
        %v1030 = vrot.slane %v891, %v1029
        %v1031 = vlaneseq
        %v1032 = vshrl.u32 %v1031, 7
        %v1033 = vsub.s32 %v623, %v1032
        %v1034 = vrot.slane %v896, %v1033
        %v1035 = vlaneseq
        %v1036 = vshrl.u32 %v1035, 7
        %v1037 = vsub.s32 %v623, %v1036
        %v1038 = vrot.slane %v901, %v1037
        %v1039 = vlaneseq
        %v1040 = vshrl.u32 %v1039, 7
        %v1041 = vsub.s32 %v623, %v1040
        %v1042 = vrot.slane %v906, %v1041
        %v1043 = vsel %vm656, %v1018, %v1014
        %v1044 = vsel %vm658, %v1022, %v1043
        %v1045 = vsel %vm660, %v1026, %v1044
        %v1046 = vsel %vm662, %v1030, %v1045
        %v1047 = vsel %vm664, %v1034, %v1046
        %v1048 = vsel %vm666, %v1038, %v1047
        %v1049 = vsel %vm668, %v1042, %v1048
        %1051 = vst.msk [vmem:[%s308] sm:$0xff] %vm671, %v1049
        %s1052 = sand.u32 %s168, 1
        %s1053 = scalar_lea.sflag [#allocation4], %s1052
        %s1054 = sand.u32 %s168, 1
        %s1055 = smul.addr %s1054, 8
        %s1056 = scalar_lea.vmem [#allocation3], %s1055
        %p1057 = scmp.lt.s32.totalorder %s24, 3
        %s1058 = scalar_select %p1057, %s24, 3
        %s1059 = smul.addr %s1058, 8
        %s1060 = scalar_lea.vmem %s7, %s1059
        // Predicated region
        $region45: #{tpu_custom_call.1} parent=43 // pred_check
          %p1061 = pneg %p178
        $region46: #{tpu_custom_call.1} parent=43 // pred_check_branch
          %1063 = sbr.rel (%p1061) target = $region48
        $region47: #{tpu_custom_call.1} parent=43 // pred_region
          %s1065 = ssub.s32 128, 128
          %1066 = vsyncadd %s1053, %s1065
          %s1067 = smul.addr %s24, 128
          %s1068 = scalar_lea.hbm %s6, %s1067
          %s1070 = sshll.u32 %s1056, 4
          %s1071 = int_to_ptr.vmem [resolvable:$true] %s1070
          %1073 = dma.vmem_to_hbm [thread:$0]  %s1071, 128, %s1068, %s1053
        $region48: #{tpu_custom_call.1} parent=43 // pred_fallthru
          _
        // Predicated region
        $region49: #{tpu_custom_call.1} parent=43 // pred_check
          %p1074 = pneg %p204
        $region50: #{tpu_custom_call.1} parent=43 // pred_check_branch
          %1076 = sbr.rel (%p1074) target = $region52
        $region51: #{tpu_custom_call.1} parent=43 // pred_region
          _
        $region52: #{tpu_custom_call.1} parent=43 // pred_fallthru
          _
      $region44: #{tpu_custom_call.1} parent=5 // pred_fallthru
        _
      %p1077 = scmp.le.s32.totalorder 2, %s19
      // Predicated region
      $region53: #{tpu_custom_call.1} parent=5 // pred_check
        %p1078 = pneg %p1077
      $region54: #{tpu_custom_call.1} parent=5 // pred_check_branch
        %1080 = sbr.rel (%p1078) target = $region56
      $region55: #{tpu_custom_call.1} parent=5 // pred_region
        %s1081 = ssub.s32 %s19, 2
        // Predicated region
        $region57: #{tpu_custom_call.1} parent=55 // pred_check
          %p1082 = pneg %p184
        $region58: #{tpu_custom_call.1} parent=55 // pred_check_branch
          %1084 = sbr.rel (%p1082) target = $region60
        $region59: #{tpu_custom_call.1} parent=55 // pred_region
          %s1085 = sand.u32 %s169, 1
          %s1086 = scalar_lea.sflag [#allocation4], %s1085
          %s1087 = sand.u32 %s169, 1
          %s1088 = smul.addr %s1087, 8
          %s1089 = scalar_lea.vmem [#allocation3], %s1088
          %1090 = dma.done %s1086, 128
        $region60: #{tpu_custom_call.1} parent=55 // pred_fallthru
          _
        // Predicated region
        $region61: #{tpu_custom_call.1} parent=55 // pred_check
          %p1091 = pneg %p210
        $region62: #{tpu_custom_call.1} parent=55 // pred_check_branch
          %1093 = sbr.rel (%p1091) target = $region64
        $region63: #{tpu_custom_call.1} parent=55 // pred_region
          %p1094 = scmp.lt.s32.totalorder %s25, 3
          %s1095 = scalar_select %p1094, %s25, 3
          %s1096 = smul.addr %s1095, 8
          %s1097 = scalar_lea.vmem %s7, %s1096
        $region64: #{tpu_custom_call.1} parent=55 // pred_fallthru
          _
      $region56: #{tpu_custom_call.1} parent=5 // pred_fallthru
        _
    $region6: #{tpu_custom_call.1} parent=1 // loop_footer
      %s23 = sadd.s32 1, %s19
    $region7: #{tpu_custom_call.1} parent=1 // loop_footer_branch
      %18 = sbr.rel target = $region3
    $region8: #{tpu_custom_call.1} parent=1 // loop_exit
      _
    %1098 = vsyncpa [#allocation4], 1
    %s1099 = scalar_lea.sflag [#allocation4], 1
    %1100 = vsyncpa %s1099, 1

</llo_original>
